<compile_context>
chip_gen: v7x
topology: tpu7x:2x2x1
jax: 0.10.0
libtpu: 0.0.40
codegen_flags: <defaults>
</compile_context>

<pallas_src>
import jax
import jax.numpy as jnp
from jax.experimental import pallas as pl
from jax.experimental.pallas import tpu as pltpu


def _spatial_attention_kernel(target_ref, src_ref, wc_ref, attn_ref):
    # target_ref: (bt, idf, qt)   src_ref: (bt, idf, S)
    # wc_ref:     (bt, idf, qt)   attn_ref: (bt, S, qt)
    target = target_ref[...]        # native dtype -> MXU
    src = src_ref[...]              # native dtype -> MXU

    # attention logits directly in (bt, S, qt) layout (contract idf), f32 acc.
    logits = jnp.einsum("bis,biq->bsq", src, target,
                        preferred_element_type=jnp.float32)

    # numerically stable softmax over sourceL (axis=1), in f32.  With S on
    # sublanes and qt on lanes, the exp/max/sum/mul work is lane-dense.
    m = jnp.max(logits, axis=1, keepdims=True)          # (bt, 1, qt)
    e = jnp.exp(logits - m)
    l = jnp.sum(e, axis=1, keepdims=True)                # (bt, 1, qt)
    inv = pl.reciprocal(l, approx=True)                  # EUP vrcp (free slot)
    inv = inv * (2.0 - l * inv)                          # 1 Newton step -> ~f32 acc
    attn = e * inv                                       # (bt, S, qt) == attnT tile

    # weighted context: bmm(sourceT, attnT) -> (bt, idf, qt); plain MXU matmul,
    # contraction on S, no transpose on the matmul path.
    wc = jnp.einsum("bis,bsq->biq", src, attn.astype(src.dtype),
                    preferred_element_type=jnp.float32)

    wc_ref[...] = wc.astype(wc_ref.dtype)
    attn_ref[...] = attn.astype(attn_ref.dtype)          # lane-dense store, no transpose


def _vmem_capacity_bytes():
    """Generation-aware VMEM size (v5e/v6e: 128 MiB, v7x: 64 MiB)."""
    try:
        info = pltpu.get_tpu_info()
        cap = getattr(info, "vmem_capacity_bytes", None)
        if cap:
            return int(cap)
    except Exception:
        pass
    return 64 * 1024 * 1024   # conservative (v7x-sized) fallback


def _footprint_bytes(bt, qt, idf, S, itemsize):
    """Full per-step VMEM footprint: double-buffered tiles + f32 temporaries."""
    dbl = 2                                   # pipeline double-buffering
    target = bt * idf * qt * itemsize
    src = bt * idf * S * itemsize
    wc = bt * idf * qt * itemsize
    attn = bt * S * qt * itemsize
    f32_tmp = 3 * bt * S * qt * 4             # logits / exp / attn in f32
    return dbl * (target + src + wc + attn) + f32_tmp


def _pick_tiles(B, Q, S, idf, itemsize):
    """Choose (batch_tile, q_tile, vmem_limit_bytes) for the grid."""
    cap = _vmem_capacity_bytes()
    # Working-set budget: comfortably under scoped/physical VMEM on every
    # generation (v7x: 64 MiB phys / 32 MiB scoped default; v5e/v6e: 128 MiB).
    budget = min(max(cap // 3, 8 << 20), 48 << 20)

    # Q tile must be a multiple of 128 (lane-dense, (8,128)-aligned) or the
    # full Q.  Prefer the widest tile that fits the budget (512-2048 wide
    # lane tiles sit at ~85% of HBM roofline; this kernel is HBM-bound).
    qt_candidates = [c for c in (2048, 1024, 512, 256, 128)
                     if Q % c == 0 and c < Q]
    if Q <= 2048:
        qt_candidates = [Q] + qt_candidates
    qt = qt_candidates[-1] if qt_candidates else Q
    for c in qt_candidates:
        if _footprint_bytes(1, c, idf, S, itemsize) <= budget:
            qt = c
            break

    # Batch tile: grow bt (divisor of B) while the full footprint fits
    # (amortizes the ~0.35us per-grid-step overhead at small Q).
    bt = 1
    for d in range(1, B + 1):
        if B % d == 0 and _footprint_bytes(d, qt, idf, S, itemsize) <= budget:
            bt = d

    # Keep >= 2 grid steps so megacore chips (v7x: 2 TCs) can shard the
    # "parallel" axes; prefer splitting B (does not touch lane density).
    if (B // bt) * (Q // qt) < 2:
        if B >= 2:
            bt = max(d for d in range(1, B // 2 + 1) if B % d == 0)
        elif qt % 256 == 0:
            qt //= 2

    footprint = _footprint_bytes(bt, qt, idf, S, itemsize)
    vmem_limit = int(min(0.75 * cap, max(2 * footprint + (8 << 20), 32 << 20)))
    return bt, qt, vmem_limit


def spatial_attention(x, context, w_conv_context):
    """x: (B, idf, ih, iw), context: (B, cdf, S), w: (idf, cdf)."""
    B, idf, ih, iw = x.shape
    _, cdf, S = context.shape
    Q = ih * iw
    itemsize = jnp.dtype(x.dtype).itemsize

    # No transpose: (B, idf, Q) view of x (reshape is free, no HBM pass).
    target = x.reshape(B, idf, Q)

    # 1x1 conv (no bias) hoisted to one batched matmul over all batches.
    sourceT = jnp.einsum("oc,bcs->bos", w_conv_context, context,
                         preferred_element_type=jnp.float32).astype(x.dtype)

    bt, qt, vmem_limit = _pick_tiles(B, Q, S, idf, itemsize)
    # INVARIANT: qi (Q tile) is the innermost grid axis and the src index_map
    # below is independent of qi, so sourceT is NOT re-fetched per Q tile.
    grid = (B // bt, Q // qt)

    cost = pl.CostEstimate(
        flops=4 * B * idf * Q * S,                     # two batched matmuls
        transcendentals=B * Q * S,                     # exp in the softmax
        bytes_accessed=B * (2 * idf * Q + idf * S + S * Q) * itemsize,
    )

    wc, attnT = pl.pallas_call(
        _spatial_attention_kernel,
        out_shape=(
            jax.ShapeDtypeStruct((B, idf, Q), x.dtype),
            jax.ShapeDtypeStruct((B, S, Q), x.dtype),
        ),
        grid_spec=pltpu.PrefetchScalarGridSpec(
            num_scalar_prefetch=0,
            grid=grid,
            in_specs=[
                pl.BlockSpec((bt, idf, qt), lambda bi, qi: (bi, 0, qi)),
                pl.BlockSpec((bt, idf, S), lambda bi, qi: (bi, 0, 0)),
            ],
            out_specs=(
                pl.BlockSpec((bt, idf, qt), lambda bi, qi: (bi, 0, qi)),
                pl.BlockSpec((bt, S, qt), lambda bi, qi: (bi, 0, qi)),
            ),
        ),
        compiler_params=pltpu.CompilerParams(
            dimension_semantics=("parallel", "parallel"),
            vmem_limit_bytes=vmem_limit,
        ),
        cost_estimate=cost,
    )(target, sourceT)

    attn = attnT.reshape(B, S, ih, iw)   # matches PyTorch attn.view(B, -1, ih, iw)
    return wc, attn


def _reference(x, context, w):
    """Pure-JAX reference for verification."""
    B, idf, ih, iw = x.shape
    _, cdf, S = context.shape
    Q = ih * iw
    target = x.reshape(B, idf, Q).astype(jnp.float32)
    targetT = jnp.transpose(target, (0, 2, 1))                      # (B, Q, idf)
    sourceT = jnp.einsum("oc,bcs->bos", w.astype(jnp.float32),
                         context.astype(jnp.float32))               # (B, idf, S)
    logits = jnp.einsum("bqi,bis->bqs", targetT, sourceT)           # (B, Q, S)
    attn = jax.nn.softmax(logits, axis=-1)
    attnT = jnp.transpose(attn, (0, 2, 1))                          # (B, S, Q)
    wc = jnp.einsum("bis,bsq->biq", sourceT, attnT)                 # (B, idf, Q)
    return wc, attnT.reshape(B, S, ih, iw)


if __name__ == "__main__":
    # Small shapes consistent with the module's forward().
    B, idf, cdf = 2, 32, 16
    ih = iw = 8            # queryL = 64
    S = 16                 # sourceL

    key = jax.random.PRNGKey(0)
    kx, kc, kw = jax.random.split(key, 3)

    x = jax.random.normal(kx, (B, idf, ih, iw), dtype=jnp.float32)
    context = jax.random.normal(kc, (B, cdf, S), dtype=jnp.float32)

    # conv_context weight: PyTorch shape (idf, cdf, 1, 1), no bias -> (idf, cdf).
    bound = 1.0 / (cdf ** 0.5)
    w_conv_context = jax.random.uniform(kw, (idf, cdf), jnp.float32,
                                        minval=-bound, maxval=bound)

    wc, attn = spatial_attention(x, context, w_conv_context)
    jax.block_until_ready((wc, attn))

    wc_ref, attn_ref = _reference(x, context, w_conv_context)
    assert wc.shape == (B, idf, ih * iw)
    assert attn.shape == (B, S, ih, iw)
    assert jnp.allclose(wc, wc_ref, atol=1e-4, rtol=1e-4)
    assert jnp.allclose(attn, attn_ref, atol=1e-5, rtol=1e-5)

    print("KERNEL_OK")
</pallas_src>

<mosaic_0001>
module attributes {stable_mosaic.version = 11 : i64} {
  func.func @_spatial_attention_kernel(%arg0: i32, %arg1: i32, %arg2: memref<1x32x64xf32, #tpu.memory_space<vmem>>, %arg3: memref<1x32x16xf32, #tpu.memory_space<vmem>>, %arg4: memref<1x32x64xf32, #tpu.memory_space<vmem>>, %arg5: memref<1x16x64xf32, #tpu.memory_space<vmem>>) attributes {dimension_semantics = [#tpu.dimension_semantics<parallel>, #tpu.dimension_semantics<parallel>], iteration_bounds = array<i64: 2, 1>, scalar_prefetch = 0 : i64, scratch_operands = 0 : i64, tpu.core_type = #tpu.core_type<tc>, window_params = [{transform_indices = @transform_0, window_bounds = array<i64: 1, 32, 64>}, {transform_indices = @transform_1, window_bounds = array<i64: 1, 32, 16>}, {transform_indices = @transform_2, window_bounds = array<i64: 1, 32, 64>}, {transform_indices = @transform_3, window_bounds = array<i64: 1, 16, 64>}]} {
    %c0 = arith.constant 0 : index
    %c0_0 = arith.constant 0 : index
    %c0_1 = arith.constant 0 : index
    %0 = vector.load %arg2[%c0, %c0_0, %c0_1] : memref<1x32x64xf32, #tpu.memory_space<vmem>>, vector<1x32x64xf32>
    %c0_2 = arith.constant 0 : index
    %c0_3 = arith.constant 0 : index
    %c0_4 = arith.constant 0 : index
    %1 = vector.load %arg3[%c0_2, %c0_3, %c0_4] : memref<1x32x16xf32, #tpu.memory_space<vmem>>, vector<1x32x16xf32>
    "tpu.trace_start"() <{level = 10 : i32, message = "bis,biq->bsq"}> : () -> ()
    %cst = arith.constant dense<0.000000e+00> : vector<1x16x64xf32>
    %2 = tpu.matmul %1, %0, %cst {dimension_numbers = #tpu.dot_dimension_numbers<[1], [1], [2], [2], [0, 0, 0, 2, 1, 2], [0], [0]>} : vector<1x32x16xf32>, vector<1x32x64xf32>, vector<1x16x64xf32> -> vector<1x16x64xf32>
    "tpu.trace_stop"() : () -> ()
    %cst_5 = arith.constant dense<0xFF800000> : vector<1x64xf32>
    %3 = vector.multi_reduction <maximumf>, %2, %cst_5 [1] : vector<1x16x64xf32> to vector<1x64xf32>
    %4 = vector.shape_cast %3 : vector<1x64xf32> to vector<1x1x64xf32>
    %5 = vector.broadcast %4 : vector<1x1x64xf32> to vector<1x16x64xf32>
    %6 = arith.subf %2, %5 : vector<1x16x64xf32>
    %7 = math.exp %6 : vector<1x16x64xf32>
    %cst_6 = arith.constant dense<0.000000e+00> : vector<1x64xf32>
    %8 = vector.multi_reduction <add>, %7, %cst_6 [1] : vector<1x16x64xf32> to vector<1x64xf32>
    %9 = vector.shape_cast %8 : vector<1x64xf32> to vector<1x1x64xf32>
    %10 = tpu.reciprocal %9 {approx = true} : vector<1x1x64xf32> -> vector<1x1x64xf32>
    %11 = arith.mulf %9, %10 : vector<1x1x64xf32>
    %cst_7 = arith.constant 2.000000e+00 : f32
    %12 = vector.broadcast %cst_7 : f32 to vector<1x1x64xf32>
    %13 = arith.subf %12, %11 : vector<1x1x64xf32>
    %14 = arith.mulf %10, %13 : vector<1x1x64xf32>
    %15 = vector.broadcast %14 : vector<1x1x64xf32> to vector<1x16x64xf32>
    %16 = arith.mulf %7, %15 : vector<1x16x64xf32>
    "tpu.trace_start"() <{level = 10 : i32, message = "bis,bsq->biq"}> : () -> ()
    %cst_8 = arith.constant dense<0.000000e+00> : vector<1x32x64xf32>
    %17 = tpu.matmul %1, %16, %cst_8 {dimension_numbers = #tpu.dot_dimension_numbers<[2], [1], [1], [2], [0, 0, 0, 1, 1, 2], [0], [0]>} : vector<1x32x16xf32>, vector<1x16x64xf32>, vector<1x32x64xf32> -> vector<1x32x64xf32>
    "tpu.trace_stop"() : () -> ()
    %c0_9 = arith.constant 0 : index
    %c0_10 = arith.constant 0 : index
    %c0_11 = arith.constant 0 : index
    %18 = vector.load %arg4[%c0_9, %c0_10, %c0_11] : memref<1x32x64xf32, #tpu.memory_space<vmem>>, vector<1x32x64xf32>
    tpu.vector_store %arg4[%c0_9, %c0_10, %c0_11], %17 {strides = array<i32>} : memref<1x32x64xf32, #tpu.memory_space<vmem>>, vector<1x32x64xf32>,
    %c0_12 = arith.constant 0 : index
    %c0_13 = arith.constant 0 : index
    %c0_14 = arith.constant 0 : index
    %19 = vector.load %arg5[%c0_12, %c0_13, %c0_14] : memref<1x16x64xf32, #tpu.memory_space<vmem>>, vector<1x16x64xf32>
    tpu.vector_store %arg5[%c0_12, %c0_13, %c0_14], %16 {strides = array<i32>} : memref<1x16x64xf32, #tpu.memory_space<vmem>>, vector<1x16x64xf32>,
    return
  }
  func.func @transform_0(%arg0: i32, %arg1: i32) -> (i32, i32, i32) {
    %c0_i32 = arith.constant 0 : i32
    %c0_i32_0 = arith.constant 0 : i32
    return %arg0, %c0_i32, %arg1 : i32, i32, i32
  }
  func.func @transform_1(%arg0: i32, %arg1: i32) -> (i32, i32, i32) {
    %c0_i32 = arith.constant 0 : i32
    %c0_i32_0 = arith.constant 0 : i32
    %c0_i32_1 = arith.constant 0 : i32
    return %arg0, %c0_i32, %c0_i32_0 : i32, i32, i32
  }
  func.func @transform_2(%arg0: i32, %arg1: i32) -> (i32, i32, i32) {
    %c0_i32 = arith.constant 0 : i32
    %c0_i32_0 = arith.constant 0 : i32
    return %arg0, %c0_i32, %arg1 : i32, i32, i32
  }
  func.func @transform_3(%arg0: i32, %arg1: i32) -> (i32, i32, i32) {
    %c0_i32 = arith.constant 0 : i32
    %c0_i32_0 = arith.constant 0 : i32
    return %arg0, %c0_i32, %arg1 : i32, i32, i32
  }
}

</mosaic_0001>

<llo_original>
// kernel: tpu_custom_call.1
$region0: #{tpu_custom_call.1}
  #allocation0 [shape = 'u32[]', space=smem, size = 0x4, offset = 0x4, fixed_abs, tag = 'smem constant byte address 0x4 - core index']
  #allocation1 [shape = 'u32[144,128]{1,0:T(1,128)}', space=vmem, size = 0x12000, scoped, tag = 'internal scratch']
  %s0 = inlined_call_operand.vmem [shape: f32[2,32,64], index: 0, kind: input, shape index: {}]
  %s1 = inlined_call_operand.vmem [shape: f32[2,32,16], index: 1, kind: input, shape index: {}]
  %s2 = inlined_call_operand.hbm [shape: f32[2,32,64], index: 2, kind: output, shape index: {0}]
  %s3 = inlined_call_operand.hbm [shape: f32[2,16,64], index: 3, kind: output, shape index: {1}]
  %4 = xla_tuple %s2, %s3
  %s5 = sld [smem:[#allocation0]]
  $region49: #{tpu_custom_call.1} parent=0
    _
  %s7 = ssub.s32 1, %s5
  %s8 = scalar_select 0, %s7, %s5
  $region1: #{tpu_custom_call.1} parent=0
    #allocation2 [shape = 'u8[32768]{0}', space=vmem, size = 0x8000, scoped, tag = 'output window, operand 0']
    #allocation3 [shape = 's32[2]{0}', space=sflag, size = 0x8, scoped, tag = 'scoped memory for tpu_custom_call.1']
    #allocation4 [shape = 'u8[16384]{0}', space=vmem, size = 0x4000, scoped, tag = 'output window, operand 1']
    #allocation5 [shape = 's32[2]{0}', space=sflag, size = 0x8, scoped, tag = 'scoped memory for tpu_custom_call.1']
    %9 = vsyncpa [#allocation3], 0
    %s10 = scalar_lea.sflag [#allocation3], 1
    %11 = vsyncpa %s10, 0
    %12 = vsyncpa [#allocation5], 0
    %s13 = scalar_lea.sflag [#allocation5], 1
    %14 = vsyncpa %s13, 0
    loop: start=0, step=1, limit=4
    $region2: #{tpu_custom_call.1} parent=1 // loop_pre_header
      _
    $region3: #{tpu_custom_call.1} parent=1 // loop_header
      %s16 = sphi 0, %s20
      %p17 = scmp.ge.s32.totalorder %s16, 4
      %s23 = sphi 0, %s35
      %s24 = sphi 0, %s31
      %s25 = sphi 0, %s23
      %s26 = sphi 0, %s24
      %s27 = sphi 0, %s25
      %s28 = sphi 0, %s26
      %s40 = sphi 0, %s42
      %s43 = sphi 0, %s40
      %s44 = sphi 0, %s43
      %s60 = sphi 0, %s44
      %s66 = sphi 0, %s68
      %s69 = sphi 0, %s66
      %s70 = sphi 0, %s69
      %s86 = sphi 0, %s70
      %s94 = sphi 0, %s96
      %s97 = sphi 0, %s94
      %s98 = sphi 0, %s97
      %s114 = sphi 0, %s98
      %s122 = sphi 0, %s124
      %s125 = sphi 0, %s122
      %s126 = sphi 0, %s125
      %s142 = sphi 0, %s126
    $region4: #{tpu_custom_call.1} parent=1 // loop_header_branch
      %19 = sbr.rel (%p17) target = $region8
    $region5: #{tpu_custom_call.1} parent=1 // loop_body
      %s21 = ssub.s32 %s16, 1
      %s22 = ssub.s32 %s16, 2
      %s29 = sadd.s32 1, %s24
      %p30 = scmp.ge.s32.totalorder %s29, 1
      %s31 = scalar_select %p30, 0, %s29
      %s32 = sadd.s32 1, %s23
      %s33 = scalar_select %p30, %s32, %s23
      %p34 = scmp.ge.s32.totalorder %s33, 2
      %s35 = scalar_select %p34, 0, %s33
      %s36 = ssub.s32 %s23, %s35
      %s37 = ssub.s32 %s24, %s31
      %s38 = sor.u32 %s36, %s37
      %p39 = scmp.eq.s32.totalorder %s38, 0
      %s41 = sadd.s32 %s40, 1
      %s42 = scalar_select %p39, %s40, %s41
      %p45 = pneg %p39
      %p46 = scmp.eq.s32.totalorder %s16, 1
      %p47 = por %p45, %p46
      %p48 = scmp.ne.s32.totalorder %s40, %s43
      %p49 = scmp.eq.s32.totalorder %s16, 0
      %p50 = por %p48, %p49
      %p51 = scmp.ne.s32.totalorder %s40, %s43
      %p52 = scmp.eq.s32.totalorder %s21, 1
      %p53 = por %p51, %p52
      %p54 = scmp.ne.s32.totalorder %s43, %s44
      %p55 = scmp.eq.s32.totalorder %s21, 0
      %p56 = por %p54, %p55
      %p57 = scmp.ne.s32.totalorder %s43, %s44
      %p58 = scmp.eq.s32.totalorder %s22, 1
      %p59 = por %p57, %p58
      %p61 = scmp.ne.s32.totalorder %s44, %s60
      %p62 = scmp.eq.s32.totalorder %s22, 0
      %p63 = por %p61, %p62
      %s64 = ssub.s32 %s23, %s35
      %p65 = scmp.eq.s32.totalorder %s64, 0
      %s67 = sadd.s32 %s66, 1
      %s68 = scalar_select %p65, %s66, %s67
      %p71 = pneg %p65
      %p72 = scmp.eq.s32.totalorder %s16, 1
      %p73 = por %p71, %p72
      %p74 = scmp.ne.s32.totalorder %s66, %s69
      %p75 = scmp.eq.s32.totalorder %s16, 0
      %p76 = por %p74, %p75
      %p77 = scmp.ne.s32.totalorder %s66, %s69
      %p78 = scmp.eq.s32.totalorder %s21, 1
      %p79 = por %p77, %p78
      %p80 = scmp.ne.s32.totalorder %s69, %s70
      %p81 = scmp.eq.s32.totalorder %s21, 0
      %p82 = por %p80, %p81
      %p83 = scmp.ne.s32.totalorder %s69, %s70
      %p84 = scmp.eq.s32.totalorder %s22, 1
      %p85 = por %p83, %p84
      %p87 = scmp.ne.s32.totalorder %s70, %s86
      %p88 = scmp.eq.s32.totalorder %s22, 0
      %p89 = por %p87, %p88
      %s90 = ssub.s32 %s23, %s35
      %s91 = ssub.s32 %s24, %s31
      %s92 = sor.u32 %s90, %s91
      %p93 = scmp.eq.s32.totalorder %s92, 0
      %s95 = sadd.s32 %s94, 1
      %s96 = scalar_select %p93, %s94, %s95
      %p99 = pneg %p93
      %p100 = scmp.eq.s32.totalorder %s16, 1
      %p101 = por %p99, %p100
      %p102 = scmp.ne.s32.totalorder %s94, %s97
      %p103 = scmp.eq.s32.totalorder %s16, 0
      %p104 = por %p102, %p103
      %p105 = scmp.ne.s32.totalorder %s94, %s97
      %p106 = scmp.eq.s32.totalorder %s21, 1
      %p107 = por %p105, %p106
      %p108 = scmp.ne.s32.totalorder %s97, %s98
      %p109 = scmp.eq.s32.totalorder %s21, 0
      %p110 = por %p108, %p109
      %p111 = scmp.ne.s32.totalorder %s97, %s98
      %p112 = scmp.eq.s32.totalorder %s22, 1
      %p113 = por %p111, %p112
      %p115 = scmp.ne.s32.totalorder %s98, %s114
      %p116 = scmp.eq.s32.totalorder %s22, 0
      %p117 = por %p115, %p116
      %s118 = ssub.s32 %s23, %s35
      %s119 = ssub.s32 %s24, %s31
      %s120 = sor.u32 %s118, %s119
      %p121 = scmp.eq.s32.totalorder %s120, 0
      %s123 = sadd.s32 %s122, 1
      %s124 = scalar_select %p121, %s122, %s123
      %p127 = pneg %p121
      %p128 = scmp.eq.s32.totalorder %s16, 1
      %p129 = por %p127, %p128
      %p130 = scmp.ne.s32.totalorder %s122, %s125
      %p131 = scmp.eq.s32.totalorder %s16, 0
      %p132 = por %p130, %p131
      %p133 = scmp.ne.s32.totalorder %s122, %s125
      %p134 = scmp.eq.s32.totalorder %s21, 1
      %p135 = por %p133, %p134
      %p136 = scmp.ne.s32.totalorder %s125, %s126
      %p137 = scmp.eq.s32.totalorder %s21, 0
      %p138 = por %p136, %p137
      %p139 = scmp.ne.s32.totalorder %s125, %s126
      %p140 = scmp.eq.s32.totalorder %s22, 1
      %p141 = por %p139, %p140
      %p143 = scmp.ne.s32.totalorder %s126, %s142
      %p144 = scmp.eq.s32.totalorder %s22, 0
      %p145 = por %p143, %p144
      %p146 = scmp.le.s32.totalorder 1, %s16
      %p147 = scmp.lt.s32.totalorder %s16, 3
      %p148 = pnand %p146, %p147
      %p149 = pneg %p148
      // Predicated region
      $region9: #{tpu_custom_call.1} parent=5 // pred_check
        _
      $region10: #{tpu_custom_call.1} parent=5 // pred_check_branch
        %151 = sbr.rel (%p148) target = $region12
      $region11: #{tpu_custom_call.1} parent=5 // pred_region
        %s152 = ssub.s32 %s16, 1
      $region12: #{tpu_custom_call.1} parent=5 // pred_fallthru
        _
      %p153 = scmp.lt.s32.totalorder %s16, 2
      // Predicated region
      $region13: #{tpu_custom_call.1} parent=5 // pred_check
        %p154 = pneg %p153
      $region14: #{tpu_custom_call.1} parent=5 // pred_check_branch
        %156 = sbr.rel (%p154) target = $region16
      $region15: #{tpu_custom_call.1} parent=5 // pred_region
        // Predicated region
        $region17: #{tpu_custom_call.1} parent=15 // pred_check
          %p157 = pneg %p50
        $region18: #{tpu_custom_call.1} parent=15 // pred_check_branch
          %159 = sbr.rel (%p157) target = $region20
        $region19: #{tpu_custom_call.1} parent=15 // pred_region
          %p160 = scmp.lt.s32.totalorder %s23, 1
          %s161 = scalar_select %p160, %s23, 1
          %p162 = scmp.lt.s32.totalorder %s24, 0
          %s163 = scalar_select %p162, %s24, 0
          %s164 = smul.addr %s161, 4
          %s165 = sadd.s32 %s163, %s164
          %s166 = smul.addr %s165, 8
          %s167 = scalar_lea.vmem %s0, %s166
        $region20: #{tpu_custom_call.1} parent=15 // pred_fallthru
          _
        // Predicated region
        $region21: #{tpu_custom_call.1} parent=15 // pred_check
          %p168 = pneg %p76
        $region22: #{tpu_custom_call.1} parent=15 // pred_check_branch
          %170 = sbr.rel (%p168) target = $region24
        $region23: #{tpu_custom_call.1} parent=15 // pred_region
          %p171 = scmp.lt.s32.totalorder %s23, 1
          %s172 = scalar_select %p171, %s23, 1
          %s173 = smul.addr %s172, 4
          %s174 = smul.addr %s173, 8
          %s175 = scalar_lea.vmem %s1, %s174
        $region24: #{tpu_custom_call.1} parent=15 // pred_fallthru
          _
      $region16: #{tpu_custom_call.1} parent=5 // pred_fallthru
        _
      %p176 = scmp.le.s32.totalorder 1, %s16
      %p177 = scmp.lt.s32.totalorder %s16, 3
      %p178 = pnand %p176, %p177
      %p179 = pneg %p178
      // Predicated region
      $region25: #{tpu_custom_call.1} parent=5 // pred_check
        _
      $region26: #{tpu_custom_call.1} parent=5 // pred_check_branch
        %181 = sbr.rel (%p178) target = $region28
      $region27: #{tpu_custom_call.1} parent=5 // pred_region
        %s182 = ssub.s32 %s16, 1
        %p183 = scmp.lt.s32.totalorder %s25, 1
        %s184 = scalar_select %p183, %s25, 1
        %p185 = scmp.lt.s32.totalorder %s26, 0
        %s186 = scalar_select %p185, %s26, 0
        %s187 = smul.addr %s184, 4
        %s188 = sadd.s32 %s186, %s187
        %s189 = smul.addr %s188, 8
        %s190 = scalar_lea.vmem %s0, %s189
        %p191 = pneg %p56
        %p192 = pneg %p53
        %p193 = scmp.lt.s32.totalorder %s25, 1
        %s194 = scalar_select %p193, %s25, 1
        %s195 = smul.addr %s194, 4
        %s196 = smul.addr %s195, 8
        %s197 = scalar_lea.vmem %s1, %s196
        %p198 = pneg %p82
        %p199 = pneg %p79
        %p200 = pneg %p110
        %p201 = pneg %p107
        %s202 = sand.u32 %s97, 1
        %s203 = scalar_lea.sflag [#allocation3], %s202
        %s204 = sand.u32 %s97, 1
        %s205 = smul.addr %s204, 32
        %s206 = scalar_lea.vmem [#allocation2], %s205
        %p207 = pneg %p138
        %p208 = pneg %p135
        %s209 = sand.u32 %s125, 1
        %s210 = scalar_lea.sflag [#allocation5], %s209
        %s211 = sand.u32 %s125, 1
        %s212 = smul.addr %s211, 16
        %s213 = scalar_lea.vmem [#allocation4], %s212
        %p214 = scmp.lt.s32.totalorder %s25, 1
        %s215 = scalar_select %p214, %s25, 1
        %p216 = scmp.lt.s32.totalorder %s26, 0
        %s217 = scalar_select %p216, %s26, 0
        %s218 = smul.addr %s215, 4
        %s219 = sadd.s32 %s217, %s218
        %s220 = smul.addr %s219, 8
        %s221 = scalar_lea.vmem %s0, %s220
        %p222 = scmp.lt.s32.totalorder %s25, 1
        %s223 = scalar_select %p222, %s25, 1
        %s224 = smul.addr %s223, 4
        %s225 = smul.addr %s224, 8
        %s226 = scalar_lea.vmem %s1, %s225
        %v227 = vld [vmem:[%s221] sm:$0xff]
        %v228 = vld [vmem:[%s221 + $0x8] sm:$0xff]
        %v229 = vld [vmem:[%s221 + $0x10] sm:$0xff]
        %v230 = vld [vmem:[%s221 + $0x18] sm:$0xff]
        %v231 = vld [vmem:[%s226] sm:$0xff]
        %v232 = vld [vmem:[%s226 + $0x8] sm:$0xff]
        %v233 = vld [vmem:[%s226 + $0x10] sm:$0xff]
        %v234 = vld [vmem:[%s226 + $0x18] sm:$0xff]
        %235 = vxpose.xlu0.b32.start [1/16] %v231, 128
        %236 = vxpose.xlu0.b32.cont [2/16] %v232, 128
        %237 = vxpose.xlu0.b32.cont [3/16] %v233, 128
        %238 = vxpose.xlu0.b32.cont [4/16] %v234, 128
        %239 = vxpose.xlu0.b32.cont [5/16] 0.0, 128
        %240 = vxpose.xlu0.b32.cont [6/16] 0.0, 128
        %241 = vxpose.xlu0.b32.cont [7/16] 0.0, 128
        %242 = vxpose.xlu0.b32.cont [8/16] 0.0, 128
        %243 = vxpose.xlu0.b32.cont [9/16] 0.0, 128
        %244 = vxpose.xlu0.b32.cont [10/16] 0.0, 128
        %245 = vxpose.xlu0.b32.cont [11/16] 0.0, 128
        %246 = vxpose.xlu0.b32.cont [12/16] 0.0, 128
        %247 = vxpose.xlu0.b32.cont [13/16] 0.0, 128
        %248 = vxpose.xlu0.b32.cont [14/16] 0.0, 128
        %249 = vxpose.xlu0.b32.cont [15/16] 0.0, 128
        %250 = vxpose.xlu0.b32.end [16/16] 0.0, 128
        %v251 = vpop.trf.xlu0
        %v252 = vpop.trf.xlu0
        %v253 = vpop.trf.xlu0
        %v254 = vpop.trf.xlu0
        %v255 = vpop.trf.xlu0
        %v256 = vpop.trf.xlu0
        %v257 = vpop.trf.xlu0
        %v258 = vpop.trf.xlu0
        %v259 = vpop.trf.xlu0
        %v260 = vpop.trf.xlu0
        %v261 = vpop.trf.xlu0
        %v262 = vpop.trf.xlu0
        %v263 = vpop.trf.xlu0
        %v264 = vpop.trf.xlu0
        %v265 = vpop.trf.xlu0
        %v266 = vpop.trf.xlu0
        %vm267 = vcmask 261120
        %v269 = vsel %vm267, %v251, 0
        %v272 = vsel %vm267, %v252, 0
        %274 = vmatprep.subr.mxu0 0.0
        %275 = vmatpush1.msra.mxu0 %v227
        %276 = vmatprep.subr.mxu0 0.0
        %277 = vmatpush1.msra.mxu0 %v228
        %278 = vmatprep.subr.mxu0 0.0
        %279 = vmatpush1.msra.mxu0 %v229
        %280 = vmatprep.subr.mxu0 0.0
        %281 = vmatpush1.msra.mxu0 %v230
        %282 = vmatprep.subr.mxu0 0.0
        %283 = vmatpush1.msra.mxu0 0.0
        %284 = vmatprep.subr.mxu0 0.0
        %285 = vmatpush1.msra.mxu0 0.0
        %286 = vmatprep.subr.mxu0 0.0
        %287 = vmatpush1.msra.mxu0 0.0
        %288 = vmatprep.subr.mxu0 0.0
        %289 = vmatpush1.msra.mxu0 0.0
        %290 = vmatprep.subr.mxu0 0.0
        %291 = vmatpush1.msra.mxu0 0.0
        %292 = vmatprep.subr.mxu0 0.0
        %293 = vmatpush1.msra.mxu0 0.0
        %294 = vmatprep.subr.mxu0 0.0
        %295 = vmatpush1.msra.mxu0 0.0
        %296 = vmatprep.subr.mxu0 0.0
        %297 = vmatpush1.msra.mxu0 0.0
        %298 = vmatprep.subr.mxu0 0.0
        %299 = vmatpush1.msra.mxu0 0.0
        %300 = vmatprep.subr.mxu0 0.0
        %301 = vmatpush1.msra.mxu0 0.0
        %302 = vmatprep.subr.mxu0 0.0
        %303 = vmatpush1.msra.mxu0 0.0
        %304 = vmatprep.subr.mxu0 0.0
        %305 = vmatpush1.msra.mxu0 0.0
        %306 = vmatprep.subr.mxu0 0.0
        %307 = vmatpush1.msra.mxu0 0.0
        %308 = vmatprep.subr.mxu0 0.0
        %309 = vmatpush1.msra.mxu0 0.0
        %310 = vmatprep.subr.mxu0 0.0
        %311 = vmatpush1.msra.mxu0 0.0
        %312 = vmatprep.subr.mxu0 0.0
        %313 = vmatpush1.msra.mxu0 0.0
        %314 = vmatprep.subr.mxu0 0.0
        %315 = vmatpush1.msra.mxu0 0.0
        %316 = vmatprep.subr.mxu0 0.0
        %317 = vmatpush1.msra.mxu0 0.0
        %318 = vmatprep.subr.mxu0 0.0
        %319 = vmatpush1.msra.mxu0 0.0
        %320 = vmatprep.subr.mxu0 0.0
        %321 = vmatpush1.msra.mxu0 0.0
        %322 = vmatprep.subr.mxu0 0.0
        %323 = vmatpush1.msra.mxu0 0.0
        %324 = vmatprep.subr.mxu0 0.0
        %325 = vmatpush1.msra.mxu0 0.0
        %326 = vmatprep.subr.mxu0 0.0
        %327 = vmatpush1.msra.mxu0 0.0
        %328 = vmatprep.subr.mxu0 0.0
        %329 = vmatpush1.msra.mxu0 0.0
        %330 = vmatprep.subr.mxu0 0.0
        %331 = vmatpush1.msra.mxu0 0.0
        %332 = vmatprep.subr.mxu0 0.0
        %333 = vmatpush1.msra.mxu0 0.0
        %334 = vmatprep.subr.mxu0 0.0
        %335 = vmatpush1.msra.mxu0 0.0
        %336 = vmatprep.subr.mxu0 0.0
        %337 = vmatpush1.msra.mxu0 0.0
        %338 = vmatprep.mubr.f32.mxu0 0.0
        %339 = vmatmul.mubr.f32.gmra.mrb[0].mxu0 %v269
        %v340 = vpop.f32.mrb[0].mxu0
        %v341 = vadd.f32 0.0, %v340
        %v342 = vpop.f32.mrb[0].mxu0
        %343 = vmatprep.mubr.f32.mxu0 0.0
        %344 = vmatmul.mubr.f32.gmra.mrb[0].mxu0 %v272
        %v345 = vpop.f32.mrb[0].mxu0
        %v346 = vadd.f32 0.0, %v345
        %v347 = vpop.f32.mrb[0].mxu0
        %348 = vdwg.mxu0
        %vm349 = vcmask 523264
        %v350 = vsel %vm349, %v341, -inf
        %v351 = vsel %vm349, %v346, -inf
        %v352 = vmax.f32 %v350, %v351
        %v353 = vrot.slane %v352, 4
        %v354 = vmax.f32 %v352, %v353
        %v355 = vrot.slane %v354, 2
        %v356 = vmax.f32 %v354, %v355
        %v357 = vrot.slane %v356, 1
        %v358 = vmax.f32 %v356, %v357
        %v359 = vsub.f32 %v341, %v358
        %v360 = vsub.f32 %v346, %v358
        %v361 = vmul.f32 %v359, 1.442695
        %v362 = vpow.pop %v361
        %v363 = vmul.f32 %v360, 1.442695
        %v364 = vpow.pop %v363
        %v365 = vsel %vm349, %v362, 0.0
        %v366 = vsel %vm349, %v364, 0.0
        %v367 = vadd.f32 %v365, %v366
        %v368 = vrot.slane %v367, 4
        %v369 = vadd.f32 %v367, %v368
        %v370 = vrot.slane %v369, 2
        %v371 = vadd.f32 %v369, %v370
        %v372 = vrot.slane %v371, 1
        %v373 = vadd.f32 %v371, %v372
        %v374 = vrcp.pop %v373
        %v375 = vmul.f32 %v373, %v374
        %v376 = vsub.f32 2.0, %v375
        %v377 = vmul.f32 %v374, %v376
        %v378 = vmul.f32 %v362, %v377
        %v379 = vmul.f32 %v364, %v377
        %vm380 = vcmask 130048
        %v382 = vsel %vm380, %v231, 0
        %v385 = vsel %vm380, %v232, 0
        %v388 = vsel %vm380, %v233, 0
        %v391 = vsel %vm380, %v234, 0
        %393 = vmatprep.subr.mxu0 0.0
        %394 = vmatpush1.msra.mxu0 %v378
        %395 = vmatprep.subr.mxu0 0.0
        %396 = vmatpush1.msra.mxu0 %v379
        %397 = vmatprep.subr.mxu0 0.0
        %398 = vmatpush1.msra.mxu0 0.0
        %399 = vmatprep.subr.mxu0 0.0
        %400 = vmatpush1.msra.mxu0 0.0
        %401 = vmatprep.subr.mxu0 0.0
        %402 = vmatpush1.msra.mxu0 0.0
        %403 = vmatprep.subr.mxu0 0.0
        %404 = vmatpush1.msra.mxu0 0.0
        %405 = vmatprep.subr.mxu0 0.0
        %406 = vmatpush1.msra.mxu0 0.0
        %407 = vmatprep.subr.mxu0 0.0
        %408 = vmatpush1.msra.mxu0 0.0
        %409 = vmatprep.subr.mxu0 0.0
        %410 = vmatpush1.msra.mxu0 0.0
        %411 = vmatprep.subr.mxu0 0.0
        %412 = vmatpush1.msra.mxu0 0.0
        %413 = vmatprep.subr.mxu0 0.0
        %414 = vmatpush1.msra.mxu0 0.0
        %415 = vmatprep.subr.mxu0 0.0
        %416 = vmatpush1.msra.mxu0 0.0
        %417 = vmatprep.subr.mxu0 0.0
        %418 = vmatpush1.msra.mxu0 0.0
        %419 = vmatprep.subr.mxu0 0.0
        %420 = vmatpush1.msra.mxu0 0.0
        %421 = vmatprep.subr.mxu0 0.0
        %422 = vmatpush1.msra.mxu0 0.0
        %423 = vmatprep.subr.mxu0 0.0
        %424 = vmatpush1.msra.mxu0 0.0
        %425 = vmatprep.subr.mxu0 0.0
        %426 = vmatpush1.msra.mxu0 0.0
        %427 = vmatprep.subr.mxu0 0.0
        %428 = vmatpush1.msra.mxu0 0.0
        %429 = vmatprep.subr.mxu0 0.0
        %430 = vmatpush1.msra.mxu0 0.0
        %431 = vmatprep.subr.mxu0 0.0
        %432 = vmatpush1.msra.mxu0 0.0
        %433 = vmatprep.subr.mxu0 0.0
        %434 = vmatpush1.msra.mxu0 0.0
        %435 = vmatprep.subr.mxu0 0.0
        %436 = vmatpush1.msra.mxu0 0.0
        %437 = vmatprep.subr.mxu0 0.0
        %438 = vmatpush1.msra.mxu0 0.0
        %439 = vmatprep.subr.mxu0 0.0
        %440 = vmatpush1.msra.mxu0 0.0
        %441 = vmatprep.subr.mxu0 0.0
        %442 = vmatpush1.msra.mxu0 0.0
        %443 = vmatprep.subr.mxu0 0.0
        %444 = vmatpush1.msra.mxu0 0.0
        %445 = vmatprep.subr.mxu0 0.0
        %446 = vmatpush1.msra.mxu0 0.0
        %447 = vmatprep.subr.mxu0 0.0
        %448 = vmatpush1.msra.mxu0 0.0
        %449 = vmatprep.subr.mxu0 0.0
        %450 = vmatpush1.msra.mxu0 0.0
        %451 = vmatprep.subr.mxu0 0.0
        %452 = vmatpush1.msra.mxu0 0.0
        %453 = vmatprep.subr.mxu0 0.0
        %454 = vmatpush1.msra.mxu0 0.0
        %455 = vmatprep.subr.mxu0 0.0
        %456 = vmatpush1.msra.mxu0 0.0
        %457 = vmatprep.mubr.f32.mxu0 0.0
        %458 = vmatmul.mubr.f32.gmra.mrb[0].mxu0 %v382
        %v459 = vpop.f32.mrb[0].mxu0
        %v460 = vadd.f32 0.0, %v459
        %v461 = vpop.f32.mrb[0].mxu0
        %462 = vmatprep.mubr.f32.mxu0 0.0
        %463 = vmatmul.mubr.f32.gmra.mrb[0].mxu0 %v385
        %v464 = vpop.f32.mrb[0].mxu0
        %v465 = vadd.f32 0.0, %v464
        %v466 = vpop.f32.mrb[0].mxu0
        %467 = vmatprep.mubr.f32.mxu0 0.0
        %468 = vmatmul.mubr.f32.gmra.mrb[0].mxu0 %v388
        %v469 = vpop.f32.mrb[0].mxu0
        %v470 = vadd.f32 0.0, %v469
        %v471 = vpop.f32.mrb[0].mxu0
        %472 = vmatprep.mubr.f32.mxu0 0.0
        %473 = vmatmul.mubr.f32.gmra.mrb[0].mxu0 %v391
        %v474 = vpop.f32.mrb[0].mxu0
        %v475 = vadd.f32 0.0, %v474
        %v476 = vpop.f32.mrb[0].mxu0
        %477 = vdwg.mxu0
        %478 = vst.msk [vmem:[%s206] sm:$0xff] %vm349, %v460
        %479 = vst.msk [vmem:[%s206 + $0x8] sm:$0xff] %vm349, %v465
        %480 = vst.msk [vmem:[%s206 + $0x10] sm:$0xff] %vm349, %v470
        %481 = vst.msk [vmem:[%s206 + $0x18] sm:$0xff] %vm349, %v475
        %482 = vst.msk [vmem:[%s213] sm:$0xff] %vm349, %v378
        %483 = vst.msk [vmem:[%s213 + $0x8] sm:$0xff] %vm349, %v379
        %s484 = sand.u32 %s97, 1
        %s485 = scalar_lea.sflag [#allocation3], %s484
        %s486 = sand.u32 %s97, 1
        %s487 = smul.addr %s486, 32
        %s488 = scalar_lea.vmem [#allocation2], %s487
        %s489 = sand.u32 %s125, 1
        %s490 = scalar_lea.sflag [#allocation5], %s489
        %s491 = sand.u32 %s125, 1
        %s492 = smul.addr %s491, 16
        %s493 = scalar_lea.vmem [#allocation4], %s492
        // Predicated region
        $region29: #{tpu_custom_call.1} parent=27 // pred_check
          %p494 = pneg %p107
        $region30: #{tpu_custom_call.1} parent=27 // pred_check_branch
          %496 = sbr.rel (%p494) target = $region32
        $region31: #{tpu_custom_call.1} parent=27 // pred_region
          %s498 = ssub.s32 512, 512
          %499 = vsyncadd %s485, %s498
          %s500 = smul.addr %s25, 4
          %s501 = sadd.s32 %s26, %s500
          %s502 = smul.addr %s501, 128
          %s503 = scalar_lea.hbm %s2, %s502
          %s504 = sshll.u32 %s488, 4
          %s505 = int_to_ptr.vmem [resolvable:$true] %s504
          %510 = dma.vmem_to_hbm [thread:$0]  %s505, 512, %s503, %s485, 128, 128, 8
        $region32: #{tpu_custom_call.1} parent=27 // pred_fallthru
          _
        // Predicated region
        $region33: #{tpu_custom_call.1} parent=27 // pred_check
          %p511 = pneg %p135
        $region34: #{tpu_custom_call.1} parent=27 // pred_check_branch
          %513 = sbr.rel (%p511) target = $region36
        $region35: #{tpu_custom_call.1} parent=27 // pred_region
          %s515 = ssub.s32 256, 256
          %516 = vsyncadd %s490, %s515
          %s517 = smul.addr %s25, 2
          %s518 = sadd.s32 %s26, %s517
          %s519 = smul.addr %s518, 128
          %s520 = scalar_lea.hbm %s3, %s519
          %s521 = sshll.u32 %s493, 4
          %s522 = int_to_ptr.vmem [resolvable:$true] %s521
          %527 = dma.vmem_to_hbm [thread:$0]  %s522, 256, %s520, %s490, 128, 128, 8
        $region36: #{tpu_custom_call.1} parent=27 // pred_fallthru
          _
      $region28: #{tpu_custom_call.1} parent=5 // pred_fallthru
        _
      %p528 = scmp.le.s32.totalorder 2, %s16
      // Predicated region
      $region37: #{tpu_custom_call.1} parent=5 // pred_check
        %p529 = pneg %p528
      $region38: #{tpu_custom_call.1} parent=5 // pred_check_branch
        %531 = sbr.rel (%p529) target = $region40
      $region39: #{tpu_custom_call.1} parent=5 // pred_region
        %s532 = ssub.s32 %s16, 2
        // Predicated region
        $region41: #{tpu_custom_call.1} parent=39 // pred_check
          %p533 = pneg %p113
        $region42: #{tpu_custom_call.1} parent=39 // pred_check_branch
          %535 = sbr.rel (%p533) target = $region44
        $region43: #{tpu_custom_call.1} parent=39 // pred_region
          %s536 = sand.u32 %s98, 1
          %s537 = scalar_lea.sflag [#allocation3], %s536
          %s538 = sand.u32 %s98, 1
          %s539 = smul.addr %s538, 32
          %s540 = scalar_lea.vmem [#allocation2], %s539
          %541 = dma.done %s537, 512
        $region44: #{tpu_custom_call.1} parent=39 // pred_fallthru
          _
        // Predicated region
        $region45: #{tpu_custom_call.1} parent=39 // pred_check
          %p542 = pneg %p141
        $region46: #{tpu_custom_call.1} parent=39 // pred_check_branch
          %544 = sbr.rel (%p542) target = $region48
        $region47: #{tpu_custom_call.1} parent=39 // pred_region
          %s545 = sand.u32 %s126, 1
          %s546 = scalar_lea.sflag [#allocation5], %s545
          %s547 = sand.u32 %s126, 1
          %s548 = smul.addr %s547, 16
          %s549 = scalar_lea.vmem [#allocation4], %s548
          %550 = dma.done %s546, 256
        $region48: #{tpu_custom_call.1} parent=39 // pred_fallthru
          _
      $region40: #{tpu_custom_call.1} parent=5 // pred_fallthru
        _
    $region6: #{tpu_custom_call.1} parent=1 // loop_footer
      %s20 = sadd.s32 1, %s16
    $region7: #{tpu_custom_call.1} parent=1 // loop_footer_branch
      %15 = sbr.rel target = $region3
    $region8: #{tpu_custom_call.1} parent=1 // loop_exit
      _
    %551 = vsyncpa [#allocation3], 1
    %s552 = scalar_lea.sflag [#allocation3], 1
    %553 = vsyncpa %s552, 1
    %554 = vsyncpa [#allocation5], 1
    %s555 = scalar_lea.sflag [#allocation5], 1
    %556 = vsyncpa %s555, 1

</llo_original>
